<compile_context>
chip_gen: v7x
topology: tpu7x:2x2x1
jax: 0.10.0
libtpu: 0.0.40
codegen_flags: <defaults>
</compile_context>

<pallas_src>
import jax
import jax.numpy as jnp
from jax.experimental import pallas as pl
from jax.experimental.pallas import tpu as pltpu


def _round_up(x, m):
    return (x + m - 1) // m * m


def _pad2d(a, rows, cols):
    pr, pc = rows - a.shape[0], cols - a.shape[1]
    if pr or pc:
        a = jnp.pad(a, ((0, pr), (0, pc)))
    return a


def _vmem_estimate(tile_m, tile_h, in_p, out_p, itemsize):
    """Rough double-buffered resident-set estimate for the tile choice."""
    x_b = 2 * tile_m * in_p * itemsize                 # x tile (double-buffered)
    wab_b = 2 * in_p * (2 * tile_h) * itemsize         # fused Wa|Wb tile
    bab_b = 2 * 8 * (2 * tile_h) * itemsize            # fused bias (sublane-padded)
    wo_b = 2 * tile_h * out_p * itemsize               # Wo tile
    bo_b = 2 * 8 * out_p * itemsize                    # output bias
    out_b = 2 * tile_m * out_p * itemsize              # output tile
    acc_b = tile_m * out_p * 4                         # f32 accumulator scratch
    return x_b + wab_b + bab_b + wo_b + bo_b + out_b + acc_b


def swiglu_kernel(x_ref, wab_ref, bab_ref, wo_ref, bo_ref, o_ref, acc_ref):
    j = pl.program_id(1)

    @pl.when(j == 0)
    def _init():
        # Fold the output bias into the accumulator init (saves an epilogue add).
        acc_ref[...] = (jnp.zeros(acc_ref.shape, jnp.float32)
                        + bo_ref[...].astype(jnp.float32))

    x = x_ref[...]  # (tile_m, in_p) in the native dtype -> feeds the MXU directly

    # Fused projection: one MXU matmul for [a | b] = x @ [Wa_j | Wb_j] (f32 accumulation).
    ab = jnp.dot(x, wab_ref[...], preferred_element_type=jnp.float32)
    ab = ab + bab_ref[...].astype(jnp.float32)
    th = ab.shape[1] // 2                 # tile_h: static, 128-multiple -> free slice
    a = ab[:, :th]
    b = ab[:, th:]

    # SiLU in f32 (EUP sigmoid), gate, cast back to the MXU input dtype.
    a = a * jax.nn.sigmoid(a)
    h = (a * b).astype(x.dtype)

    # Accumulate (a * b) @ Wo_j into the resident f32 scratch.
    acc_ref[...] += jnp.dot(h, wo_ref[...], preferred_element_type=jnp.float32)

    @pl.when(j == pl.num_programs(1) - 1)
    def _write():
        o_ref[...] = acc_ref[...].astype(o_ref.dtype)


def swiglu(x, wa, ba, wb, bb, wo, bo, *, tile_m=None, tile_h=None,
           vmem_limit_bytes=None):
    """x: (..., in_dim). Weights stored transposed as (in, out); biases as (1, out)."""
    orig_shape = x.shape
    in_dim = orig_shape[-1]
    hidden_dim = wa.shape[1]
    out_dim = wo.shape[1]

    x2 = x.reshape(-1, in_dim)
    m = x2.shape[0]

    itemsize = jnp.dtype(x.dtype).itemsize
    row_base = 16 if x.dtype == jnp.bfloat16 else 8   # sublane packing

    # Lane-dense (multiple-of-128) feature dims; zero padding is exact for SwiGLU.
    in_p = _round_up(in_dim, 128)
    out_p = _round_up(out_dim, 128)
    hid_p = _round_up(hidden_dim, 128)

    # ---- per-chip defaults (roofline ridge vs VMEM size) ----
    try:
        vmem_cap = int(pltpu.get_tpu_info().vmem_capacity_bytes)
    except Exception:  # pragma: no cover - conservative fallback
        vmem_cap = 128 * 1024 * 1024
    small_vmem = vmem_cap <= 64 * 1024 * 1024          # v7x-class TensorCore
    if tile_m is None:
        tile_m = 512 if small_vmem else 1024
    if tile_h is None:
        tile_h = 512 if small_vmem else 1024
    if vmem_limit_bytes is None:
        vmem_limit_bytes = (56 if small_vmem else 96) * 1024 * 1024
    # Never request the full physical VMEM: leave headroom for compiler scratch.
    vmem_limit_bytes = min(vmem_limit_bytes, vmem_cap - 8 * 1024 * 1024)

    # ---- token-axis tiling ----
    tile_m = _round_up(max(row_base, min(tile_m, _round_up(m, row_base))), row_base)
    # Keep >= 2 token tiles when there is enough work so the "parallel" axis can shard
    # across both TensorCores on v7x, while each tile stays above the roofline ridge.
    min_tile_m = 384 if small_vmem else 768
    if m >= 2 * min_tile_m:
        tile_m = min(tile_m, max(min_tile_m, _round_up((m + 1) // 2, row_base)))

    # ---- hidden-axis tiling + VMEM budget fit ----
    tile_h = max(128, min(_round_up(tile_h, 128), hid_p))
    budget = int(0.9 * vmem_limit_bytes)
    # TODO(synk): for very large in_dim (>= 8K) tile the contraction (in) axis on a third
    # grid dimension instead of only shrinking tile_h / tile_m here.
    while _vmem_estimate(tile_m, tile_h, in_p, out_p, itemsize) > budget and tile_h > 128:
        tile_h = max(128, (tile_h // 2 // 128) * 128)
    while (_vmem_estimate(tile_m, tile_h, in_p, out_p, itemsize) > budget
           and tile_m > row_base):
        tile_m = max(row_base, _round_up(tile_m // 2, row_base))

    # Rebalance tile_h so the hidden tiles cover hid_p with minimal zero padding.
    nh = -(-hid_p // tile_h)
    tile_h = _round_up(-(-hid_p // nh), 128)
    hid_pad = nh * tile_h

    m_p = _round_up(m, tile_m)
    grid = (m_p // tile_m, nh)

    # ---- pad + fuse weights (interleave per hidden tile: block j = [Wa_j | Wb_j]) ----
    x_p = _pad2d(x2, m_p, in_p)
    wa_p = _pad2d(wa, in_p, hid_pad).reshape(in_p, nh, tile_h)
    wb_p = _pad2d(wb, in_p, hid_pad).reshape(in_p, nh, tile_h)
    wab = jnp.concatenate([wa_p, wb_p], axis=2).reshape(in_p, nh * 2 * tile_h)
    ba_p = _pad2d(ba, 1, hid_pad).reshape(1, nh, tile_h)
    bb_p = _pad2d(bb, 1, hid_pad).reshape(1, nh, tile_h)
    bab = jnp.concatenate([ba_p, bb_p], axis=2).reshape(1, nh * 2 * tile_h)
    wo_p = _pad2d(wo, hid_pad, out_p)
    bo_p = _pad2d(bo, 1, out_p)

    # ---- advisory cost estimate (weights are re-streamed once per token tile) ----
    flops = 2 * m_p * (2 * in_p * hid_pad + hid_pad * out_p)
    transcendentals = m_p * hid_pad
    weight_bytes = (wab.size + wo_p.size + bab.size + bo_p.size) * itemsize
    bytes_accessed = (x_p.size + m_p * out_p) * itemsize + grid[0] * weight_bytes
    cost = pl.CostEstimate(flops=int(flops), transcendentals=int(transcendentals),
                           bytes_accessed=int(bytes_accessed))

    out = pl.pallas_call(
        swiglu_kernel,
        out_shape=jax.ShapeDtypeStruct((m_p, out_p), x.dtype),
        grid_spec=pltpu.PrefetchScalarGridSpec(
            num_scalar_prefetch=0,
            grid=grid,
            in_specs=[
                pl.BlockSpec((tile_m, in_p), lambda i, j: (i, 0)),      # x token-tile
                pl.BlockSpec((in_p, 2 * tile_h), lambda i, j: (0, j)),  # fused [Wa|Wb]_j
                pl.BlockSpec((1, 2 * tile_h), lambda i, j: (0, j)),     # fused [ba|bb]_j
                pl.BlockSpec((tile_h, out_p), lambda i, j: (j, 0)),     # Wo_j
                pl.BlockSpec((1, out_p), lambda i, j: (0, 0)),          # bo
            ],
            out_specs=pl.BlockSpec((tile_m, out_p), lambda i, j: (i, 0)),
            scratch_shapes=[pltpu.VMEM((tile_m, out_p), jnp.float32)],
        ),
        compiler_params=pltpu.CompilerParams(
            dimension_semantics=("parallel", "arbitrary"),
            vmem_limit_bytes=int(vmem_limit_bytes),
        ),
        cost_estimate=cost,
    )(x_p, wab, bab, wo_p, bo_p)

    out = out[:m, :out_dim]
    return out.reshape(*orig_shape[:-1], out_dim)


def init_params(key, in_dim, hidden_dim, out_dim):
    """Deterministic init mimicking nn.Linear (uniform ±1/sqrt(fan_in)); stored transposed."""
    ks = jax.random.split(key, 6)

    def linear(kw, kb, fan_in, fan_out):
        bound = 1.0 / jnp.sqrt(fan_in)
        w = jax.random.uniform(kw, (fan_in, fan_out), jnp.float32, -bound, bound)
        b = jax.random.uniform(kb, (1, fan_out), jnp.float32, -bound, bound)
        return w, b

    wa, ba = linear(ks[0], ks[1], in_dim, hidden_dim)
    wb, bb = linear(ks[2], ks[3], in_dim, hidden_dim)
    wo, bo = linear(ks[4], ks[5], hidden_dim, out_dim)
    return wa, ba, wb, bb, wo, bo


def swiglu_ref(x, wa, ba, wb, bb, wo, bo):
    a = jax.nn.silu(x @ wa + ba)
    b = x @ wb + bb
    return (a * b) @ wo + bo


if __name__ == "__main__":
    batch, seq, in_dim, hidden_dim, out_dim = 2, 8, 32, 64, 32
    key = jax.random.PRNGKey(0)
    kx, kp = jax.random.split(key)
    x_f32 = jax.random.normal(kx, (batch, seq, in_dim), jnp.float32)
    params_f32 = init_params(kp, in_dim, hidden_dim, out_dim)

    # f32 path: tight check against the pure-JAX reference.
    out_f32 = swiglu(x_f32, *params_f32)
    jax.block_until_ready(out_f32)
    ref_f32 = swiglu_ref(x_f32.reshape(-1, in_dim), *params_f32).reshape(
        batch, seq, out_dim)
    assert out_f32.shape == (batch, seq, out_dim)
    assert jnp.allclose(out_f32, ref_f32, atol=1e-4, rtol=1e-4), (
        float(jnp.max(jnp.abs(out_f32 - ref_f32))))

    # bf16 path (recommended production dtype: bf16 MXU inputs, f32 accumulation).
    x_bf16 = x_f32.astype(jnp.bfloat16)
    params_bf16 = tuple(p.astype(jnp.bfloat16) for p in params_f32)
    out_bf16 = swiglu(x_bf16, *params_bf16)
    jax.block_until_ready(out_bf16)
    ref_bf16 = swiglu_ref(
        x_bf16.astype(jnp.float32).reshape(-1, in_dim),
        *(p.astype(jnp.float32) for p in params_bf16)
    ).reshape(batch, seq, out_dim)
    assert out_bf16.shape == (batch, seq, out_dim)
    assert jnp.allclose(out_bf16.astype(jnp.float32), ref_bf16,
                        atol=5e-2, rtol=5e-2)

    print("KERNEL_OK")
</pallas_src>

<mosaic_0001>
module attributes {stable_mosaic.version = 11 : i64} {
  func.func @swiglu_kernel(%arg0: i32, %arg1: i32, %arg2: memref<16x128xf32, #tpu.memory_space<vmem>>, %arg3: memref<128x256xf32, #tpu.memory_space<vmem>>, %arg4: memref<1x256xf32, #tpu.memory_space<vmem>>, %arg5: memref<128x128xf32, #tpu.memory_space<vmem>>, %arg6: memref<1x128xf32, #tpu.memory_space<vmem>>, %arg7: memref<16x128xf32, #tpu.memory_space<vmem>>, %arg8: memref<16x128xf32, #tpu.memory_space<vmem>>) attributes {dimension_semantics = [#tpu.dimension_semantics<parallel>, #tpu.dimension_semantics<arbitrary>], iteration_bounds = array<i64: 1, 1>, scalar_prefetch = 0 : i64, scratch_operands = 1 : i64, tpu.core_type = #tpu.core_type<tc>, window_params = [{transform_indices = @transform_0, window_bounds = array<i64: 16, 128>}, {transform_indices = @transform_1, window_bounds = array<i64: 128, 256>}, {transform_indices = @transform_2, window_bounds = array<i64: 1, 256>}, {transform_indices = @transform_3, window_bounds = array<i64: 128, 128>}, {pipeline_mode = #tpu.pipeline_mode<synchronous>, transform_indices = @transform_4, window_bounds = array<i64: 1, 128>}, {transform_indices = @transform_5, window_bounds = array<i64: 16, 128>}]} {
    %c0_i32 = arith.constant 0 : i32
    %0 = arith.cmpi eq, %arg1, %c0_i32 : i32
    %1 = arith.extui %0 : i1 to i32
    %c0_i32_0 = arith.constant 0 : i32
    %2 = arith.cmpi ne, %1, %c0_i32_0 : i32
    scf.if %2 {
      %cst_16 = arith.constant 0.000000e+00 : f32
      %26 = vector.broadcast %cst_16 : f32 to vector<16x128xf32>
      %c0_17 = arith.constant 0 : index
      %c0_18 = arith.constant 0 : index
      %27 = vector.load %arg6[%c0_17, %c0_18] : memref<1x128xf32, #tpu.memory_space<vmem>>, vector<1x128xf32>
      %28 = vector.broadcast %27 : vector<1x128xf32> to vector<16x128xf32>
      %29 = arith.addf %26, %28 : vector<16x128xf32>
      %c0_19 = arith.constant 0 : index
      %c0_20 = arith.constant 0 : index
      %30 = vector.load %arg8[%c0_19, %c0_20] : memref<16x128xf32, #tpu.memory_space<vmem>>, vector<16x128xf32>
      tpu.vector_store %arg8[%c0_19, %c0_20], %29 {strides = array<i32>} : memref<16x128xf32, #tpu.memory_space<vmem>>, vector<16x128xf32>,
    } else {
    }
    %c0 = arith.constant 0 : index
    %c0_1 = arith.constant 0 : index
    %3 = vector.load %arg2[%c0, %c0_1] : memref<16x128xf32, #tpu.memory_space<vmem>>, vector<16x128xf32>
    %c0_2 = arith.constant 0 : index
    %c0_3 = arith.constant 0 : index
    %4 = vector.load %arg3[%c0_2, %c0_3] : memref<128x256xf32, #tpu.memory_space<vmem>>, vector<128x256xf32>
    %cst = arith.constant dense<0.000000e+00> : vector<16x256xf32>
    %5 = tpu.matmul %3, %4, %cst {dimension_numbers = #tpu.dot_dimension_numbers<[1], [0], [0], [1], [0, 0, 1, 1], [], []>} : vector<16x128xf32>, vector<128x256xf32>, vector<16x256xf32> -> vector<16x256xf32>
    %c0_4 = arith.constant 0 : index
    %c0_5 = arith.constant 0 : index
    %6 = vector.load %arg4[%c0_4, %c0_5] : memref<1x256xf32, #tpu.memory_space<vmem>>, vector<1x256xf32>
    %7 = vector.broadcast %6 : vector<1x256xf32> to vector<16x256xf32>
    %8 = arith.addf %5, %7 : vector<16x256xf32>
    %9 = vector.extract_strided_slice %8 {offsets = [0, 0], sizes = [16, 128], strides = [1, 1]} : vector<16x256xf32> to vector<16x128xf32>
    %10 = vector.extract_strided_slice %8 {offsets = [0, 128], sizes = [16, 128], strides = [1, 1]} : vector<16x256xf32> to vector<16x128xf32>
    %11 = arith.negf %9 : vector<16x128xf32>
    %12 = math.exp %11 : vector<16x128xf32>
    %cst_6 = arith.constant 1.000000e+00 : f32
    %13 = vector.broadcast %cst_6 : f32 to vector<16x128xf32>
    %14 = arith.addf %13, %12 : vector<16x128xf32>
    %15 = arith.divf %13, %14 : vector<16x128xf32>
    %16 = arith.mulf %9, %15 : vector<16x128xf32>
    %17 = arith.mulf %16, %10 : vector<16x128xf32>
    %c0_7 = arith.constant 0 : index
    %c0_8 = arith.constant 0 : index
    %18 = vector.load %arg8[%c0_7, %c0_8] : memref<16x128xf32, #tpu.memory_space<vmem>>, vector<16x128xf32>
    %c0_9 = arith.constant 0 : index
    %c0_10 = arith.constant 0 : index
    %19 = vector.load %arg5[%c0_9, %c0_10] : memref<128x128xf32, #tpu.memory_space<vmem>>, vector<128x128xf32>
    %cst_11 = arith.constant dense<0.000000e+00> : vector<16x128xf32>
    %20 = tpu.matmul %17, %19, %cst_11 {dimension_numbers = #tpu.dot_dimension_numbers<[1], [0], [0], [1], [0, 0, 1, 1], [], []>} : vector<16x128xf32>, vector<128x128xf32>, vector<16x128xf32> -> vector<16x128xf32>
    %21 = arith.addf %18, %20 : vector<16x128xf32>
    %c0_12 = arith.constant 0 : index
    %c0_13 = arith.constant 0 : index
    %22 = vector.load %arg8[%c0_12, %c0_13] : memref<16x128xf32, #tpu.memory_space<vmem>>, vector<16x128xf32>
    tpu.vector_store %arg8[%c0_12, %c0_13], %21 {strides = array<i32>} : memref<16x128xf32, #tpu.memory_space<vmem>>, vector<16x128xf32>,
    %c0_i32_14 = arith.constant 0 : i32
    %23 = arith.cmpi eq, %arg1, %c0_i32_14 : i32
    %24 = arith.extui %23 : i1 to i32
    %c0_i32_15 = arith.constant 0 : i32
    %25 = arith.cmpi ne, %24, %c0_i32_15 : i32
    scf.if %25 {
      %c0_16 = arith.constant 0 : index
      %c0_17 = arith.constant 0 : index
      %26 = vector.load %arg8[%c0_16, %c0_17] : memref<16x128xf32, #tpu.memory_space<vmem>>, vector<16x128xf32>
      %c0_18 = arith.constant 0 : index
      %c0_19 = arith.constant 0 : index
      %27 = vector.load %arg7[%c0_18, %c0_19] : memref<16x128xf32, #tpu.memory_space<vmem>>, vector<16x128xf32>
      tpu.vector_store %arg7[%c0_18, %c0_19], %26 {strides = array<i32>} : memref<16x128xf32, #tpu.memory_space<vmem>>, vector<16x128xf32>,
    } else {
    }
    return
  }
  func.func @transform_0(%arg0: i32, %arg1: i32) -> (i32, i32) {
    %c0_i32 = arith.constant 0 : i32
    %c0_i32_0 = arith.constant 0 : i32
    return %arg0, %c0_i32 : i32, i32
  }
  func.func @transform_1(%arg0: i32, %arg1: i32) -> (i32, i32) {
    %c0_i32 = arith.constant 0 : i32
    %c0_i32_0 = arith.constant 0 : i32
    return %c0_i32, %arg1 : i32, i32
  }
  func.func @transform_2(%arg0: i32, %arg1: i32) -> (i32, i32) {
    %c0_i32 = arith.constant 0 : i32
    %c0_i32_0 = arith.constant 0 : i32
    return %c0_i32, %arg1 : i32, i32
  }
  func.func @transform_3(%arg0: i32, %arg1: i32) -> (i32, i32) {
    %c0_i32 = arith.constant 0 : i32
    %c0_i32_0 = arith.constant 0 : i32
    return %arg1, %c0_i32 : i32, i32
  }
  func.func @transform_4(%arg0: i32, %arg1: i32) -> (i32, i32) {
    %c0_i32 = arith.constant 0 : i32
    %c0_i32_0 = arith.constant 0 : i32
    %c0_i32_1 = arith.constant 0 : i32
    return %c0_i32, %c0_i32_0 : i32, i32
  }
  func.func @transform_5(%arg0: i32, %arg1: i32) -> (i32, i32) {
    %c0_i32 = arith.constant 0 : i32
    %c0_i32_0 = arith.constant 0 : i32
    return %arg0, %c0_i32 : i32, i32
  }
}

</mosaic_0001>

<llo_original>
// kernel: tpu_custom_call.1
$region0: #{tpu_custom_call.1}
  #allocation0 [shape = 'u32[]', space=smem, size = 0x4, offset = 0x4, fixed_abs, tag = 'smem constant byte address 0x4 - core index']
  #allocation1 [shape = 'u32[144,128]{1,0:T(1,128)}', space=vmem, size = 0x12000, scoped, tag = 'internal scratch']
  #allocation2 [shape = 'f32[16,128]{1,0:T(8,128)}', space=vmem, size = 0x2000, scoped, tag = 'scratch operand']
  %s0 = inlined_call_operand.hbm [shape: f32[16,128], index: 0, kind: input, shape index: {}]
  %s1 = inlined_call_operand.hbm [shape: f32[128,256], index: 1, kind: input, shape index: {}]
  %s2 = inlined_call_operand.hbm [shape: f32[1,256], index: 2, kind: input, shape index: {}]
  %s3 = inlined_call_operand.hbm [shape: f32[128,128], index: 3, kind: input, shape index: {}]
  %s4 = inlined_call_operand.hbm [shape: f32[1,128], index: 4, kind: input, shape index: {}]
  %s5 = inlined_call_operand.hbm [shape: f32[16,128], index: 5, kind: output, shape index: {}]
  %s6 = sld [smem:[#allocation0]]
  $region58: #{tpu_custom_call.1} parent=0
    _
  %s8 = ssub.s32 1, %s6
  %s9 = scalar_select 0, %s8, %s6
  $region1: #{tpu_custom_call.1} parent=0
    #allocation3 [shape = 'u8[8192]{0}', space=vmem, size = 0x2000, scoped, tag = 'input window, operand 0, single buffered']
    #allocation4 [shape = 's32[1]{0}', space=sflag, size = 0x4, scoped, tag = 'scoped memory for tpu_custom_call.1']
    #allocation5 [shape = 's32[1]{0}', space=sflag, size = 0x4, scoped, tag = 'scoped memory for tpu_custom_call.1']
    #allocation6 [shape = 'u8[131072]{0}', space=vmem, size = 0x20000, scoped, tag = 'input window, operand 1, single buffered']
    #allocation7 [shape = 's32[1]{0}', space=sflag, size = 0x4, scoped, tag = 'scoped memory for tpu_custom_call.1']
    #allocation8 [shape = 'u8[1024]{0}', space=vmem, size = 0x400, scoped, tag = 'input window, operand 2, single buffered']
    #allocation9 [shape = 'u8[65536]{0}', space=vmem, size = 0x10000, scoped, tag = 'input window, operand 3, single buffered']
    #allocation10 [shape = 's32[1]{0}', space=sflag, size = 0x4, scoped, tag = 'scoped memory for tpu_custom_call.1']
    #allocation11 [shape = 'u8[512]{0}', space=vmem, size = 0x400, scoped, tag = 'input window, operand 4, single buffered']
    #allocation12 [shape = 'u8[8192]{0}', space=vmem, size = 0x2000, scoped, tag = 'output window, operand 0, single buffered']
    %10 = vsyncpa [#allocation4], 0
    %11 = vsyncpa [#allocation7], 0
    %12 = vsyncpa [#allocation10], 0
    %13 = vsyncpa [#allocation5], 0
    // Predicated region
    $region2: #{tpu_custom_call.1} parent=1 // pred_check
      _
    $region3: #{tpu_custom_call.1} parent=1 // pred_check_branch
      %15 = sbr.rel (0) target = $region5
    $region4: #{tpu_custom_call.1} parent=1 // pred_region
      %s17 = ssub.s32 256, 256
      %18 = vsyncadd [#allocation4], %s17
      %s19 = sshll.u32 [#allocation3], 4
      %s20 = int_to_ptr.vmem [resolvable:$true] %s19
      %25 = dma.hbm_to_vmem [thread:$0]  %s0, 256, %s20, [#allocation4], 128, 128, 8
    $region5: #{tpu_custom_call.1} parent=1 // pred_fallthru
      _
    // Predicated region
    $region6: #{tpu_custom_call.1} parent=1 // pred_check
      _
    $region7: #{tpu_custom_call.1} parent=1 // pred_check_branch
      %27 = sbr.rel (0) target = $region9
    $region8: #{tpu_custom_call.1} parent=1 // pred_region
      %s29 = ssub.s32 4096, 4096
      %30 = vsyncadd [#allocation7], %s29
      %s31 = sshll.u32 [#allocation6], 4
      %s32 = int_to_ptr.vmem [resolvable:$true] %s31
      %37 = dma.hbm_to_vmem [thread:$0]  %s1, 4096, %s32, [#allocation7], 256, 256, 16
    $region9: #{tpu_custom_call.1} parent=1 // pred_fallthru
      _
    // Predicated region
    $region10: #{tpu_custom_call.1} parent=1 // pred_check
      _
    $region11: #{tpu_custom_call.1} parent=1 // pred_check_branch
      %39 = sbr.rel (0) target = $region13
    $region12: #{tpu_custom_call.1} parent=1 // pred_region
      %s41 = ssub.s32 32, 32
      %42 = vsyncadd [#allocation7], %s41
      %s44 = sshll.u32 [#allocation8], 4
      %s45 = int_to_ptr.vmem [resolvable:$true] %s44
      %47 = dma.hbm_to_vmem [thread:$0]  %s2, 32, %s45, [#allocation7]
    $region13: #{tpu_custom_call.1} parent=1 // pred_fallthru
      _
    // Predicated region
    $region14: #{tpu_custom_call.1} parent=1 // pred_check
      _
    $region15: #{tpu_custom_call.1} parent=1 // pred_check_branch
      %49 = sbr.rel (0) target = $region17
    $region16: #{tpu_custom_call.1} parent=1 // pred_region
      %s51 = ssub.s32 2048, 2048
      %52 = vsyncadd [#allocation10], %s51
      %s53 = sshll.u32 [#allocation9], 4
      %s54 = int_to_ptr.vmem [resolvable:$true] %s53
      %59 = dma.hbm_to_vmem [thread:$0]  %s3, 2048, %s54, [#allocation10], 128, 128, 8
    $region17: #{tpu_custom_call.1} parent=1 // pred_fallthru
      _
    // Predicated region
    $region18: #{tpu_custom_call.1} parent=1 // pred_check
      _
    $region19: #{tpu_custom_call.1} parent=1 // pred_check_branch
      %61 = sbr.rel (0) target = $region21
    $region20: #{tpu_custom_call.1} parent=1 // pred_region
      %s63 = ssub.s32 16, 16
      %64 = vsyncadd [#allocation10], %s63
      %s66 = sshll.u32 [#allocation11], 4
      %s67 = int_to_ptr.vmem [resolvable:$true] %s66
      %69 = dma.hbm_to_vmem [thread:$0]  %s4, 16, %s67, [#allocation10]
    $region21: #{tpu_custom_call.1} parent=1 // pred_fallthru
      _
    // Predicated region
    $region22: #{tpu_custom_call.1} parent=1 // pred_check
      _
    $region23: #{tpu_custom_call.1} parent=1 // pred_check_branch
      %71 = sbr.rel (0) target = $region25
    $region24: #{tpu_custom_call.1} parent=1 // pred_region
      %72 = dma.done [#allocation4], 256
    $region25: #{tpu_custom_call.1} parent=1 // pred_fallthru
      _
    // Predicated region
    $region26: #{tpu_custom_call.1} parent=1 // pred_check
      _
    $region27: #{tpu_custom_call.1} parent=1 // pred_check_branch
      %74 = sbr.rel (0) target = $region29
    $region28: #{tpu_custom_call.1} parent=1 // pred_region
      %75 = dma.done [#allocation7], 4096
    $region29: #{tpu_custom_call.1} parent=1 // pred_fallthru
      _
    // Predicated region
    $region30: #{tpu_custom_call.1} parent=1 // pred_check
      _
    $region31: #{tpu_custom_call.1} parent=1 // pred_check_branch
      %77 = sbr.rel (0) target = $region33
    $region32: #{tpu_custom_call.1} parent=1 // pred_region
      %78 = dma.done [#allocation7], 32
    $region33: #{tpu_custom_call.1} parent=1 // pred_fallthru
      _
    // Predicated region
    $region34: #{tpu_custom_call.1} parent=1 // pred_check
      _
    $region35: #{tpu_custom_call.1} parent=1 // pred_check_branch
      %80 = sbr.rel (0) target = $region37
    $region36: #{tpu_custom_call.1} parent=1 // pred_region
      %81 = dma.done [#allocation10], 2048
    $region37: #{tpu_custom_call.1} parent=1 // pred_fallthru
      _
    // Predicated region
    $region38: #{tpu_custom_call.1} parent=1 // pred_check
      _
    $region39: #{tpu_custom_call.1} parent=1 // pred_check_branch
      %83 = sbr.rel (0) target = $region41
    $region40: #{tpu_custom_call.1} parent=1 // pred_region
      %84 = dma.done [#allocation10], 16
    $region41: #{tpu_custom_call.1} parent=1 // pred_fallthru
      _
    %p85 = scmp.eq.s32.totalorder 0, 0
    // Predicated region
    $region42: #{tpu_custom_call.1} parent=1 // pred_check
      %p86 = pneg %p85
    $region43: #{tpu_custom_call.1} parent=1 // pred_check_branch
      %88 = sbr.rel (%p86) target = $region45
    $region44: #{tpu_custom_call.1} parent=1 // pred_region
      %v89 = vld [vmem:[#allocation11] sm:$0x1]
      %v91 = vlaneseq
      %v92 = vshrl.u32 %v91, 7
      %v93 = vsub.s32 0, %v92
      %v94 = vrot.slane %v89, %v93
      %v96 = vadd.f32 %v94, 0.0
      %97 = vst [vmem:[#allocation2] sm:$0xff] %v96
      %98 = vst [vmem:[#allocation2 + $0x8] sm:$0xff] %v96
    $region45: #{tpu_custom_call.1} parent=1 // pred_fallthru
      _
    %v99 = vld [vmem:[#allocation3] sm:$0xff]
    %v100 = vld [vmem:[#allocation3 + $0x8] sm:$0xff]
    %v101 = vld [vmem:[#allocation6] sm:$0xff]
    %v102 = vld [vmem:[#allocation6 + $0x8] sm:$0xff]
    %v103 = vld [vmem:[#allocation6 + $0x10] sm:$0xff]
    %v104 = vld [vmem:[#allocation6 + $0x18] sm:$0xff]
    %v105 = vld [vmem:[#allocation6 + $0x20] sm:$0xff]
    %v106 = vld [vmem:[#allocation6 + $0x28] sm:$0xff]
    %v107 = vld [vmem:[#allocation6 + $0x30] sm:$0xff]
    %v108 = vld [vmem:[#allocation6 + $0x38] sm:$0xff]
    %v109 = vld [vmem:[#allocation6 + $0x40] sm:$0xff]
    %v110 = vld [vmem:[#allocation6 + $0x48] sm:$0xff]
    %v111 = vld [vmem:[#allocation6 + $0x50] sm:$0xff]
    %v112 = vld [vmem:[#allocation6 + $0x58] sm:$0xff]
    %v113 = vld [vmem:[#allocation6 + $0x60] sm:$0xff]
    %v114 = vld [vmem:[#allocation6 + $0x68] sm:$0xff]
    %v115 = vld [vmem:[#allocation6 + $0x70] sm:$0xff]
    %v116 = vld [vmem:[#allocation6 + $0x78] sm:$0xff]
    %v117 = vld [vmem:[#allocation6 + $0x80] sm:$0xff]
    %v118 = vld [vmem:[#allocation6 + $0x88] sm:$0xff]
    %v119 = vld [vmem:[#allocation6 + $0x90] sm:$0xff]
    %v120 = vld [vmem:[#allocation6 + $0x98] sm:$0xff]
    %v121 = vld [vmem:[#allocation6 + $0xa0] sm:$0xff]
    %v122 = vld [vmem:[#allocation6 + $0xa8] sm:$0xff]
    %v123 = vld [vmem:[#allocation6 + $0xb0] sm:$0xff]
    %v124 = vld [vmem:[#allocation6 + $0xb8] sm:$0xff]
    %v125 = vld [vmem:[#allocation6 + $0xc0] sm:$0xff]
    %v126 = vld [vmem:[#allocation6 + $0xc8] sm:$0xff]
    %v127 = vld [vmem:[#allocation6 + $0xd0] sm:$0xff]
    %v128 = vld [vmem:[#allocation6 + $0xd8] sm:$0xff]
    %v129 = vld [vmem:[#allocation6 + $0xe0] sm:$0xff]
    %v130 = vld [vmem:[#allocation6 + $0xe8] sm:$0xff]
    %v131 = vld [vmem:[#allocation6 + $0xf0] sm:$0xff]
    %v132 = vld [vmem:[#allocation6 + $0xf8] sm:$0xff]
    %v133 = vld [vmem:[#allocation8] sm:$0x3]
    %v135 = vlaneseq
    %v136 = vshrl.u32 %v135, 7
    %v137 = vsub.s32 0, %v136
    %v138 = vrot.slane %v133, %v137
    %v139 = vlaneseq
    %v140 = vshrl.u32 %v139, 7
    %v141 = vsub.s32 1, %v140
    %v142 = vrot.slane %v133, %v141
    %145 = vmatprep.subr.mxu0 %v102
    %146 = vmatpush1.msra.mxu0 %v101
    %147 = vmatprep.subr.mxu0 %v104
    %148 = vmatpush1.msra.mxu0 %v103
    %149 = vmatprep.subr.mxu0 %v106
    %150 = vmatpush1.msra.mxu0 %v105
    %151 = vmatprep.subr.mxu0 %v108
    %152 = vmatpush1.msra.mxu0 %v107
    %153 = vmatprep.subr.mxu0 %v110
    %154 = vmatpush1.msra.mxu0 %v109
    %155 = vmatprep.subr.mxu0 %v112
    %156 = vmatpush1.msra.mxu0 %v111
    %157 = vmatprep.subr.mxu0 %v114
    %158 = vmatpush1.msra.mxu0 %v113
    %159 = vmatprep.subr.mxu0 %v116
    %160 = vmatpush1.msra.mxu0 %v115
    %161 = vmatprep.subr.mxu0 %v118
    %162 = vmatpush1.msra.mxu0 %v117
    %163 = vmatprep.subr.mxu0 %v120
    %164 = vmatpush1.msra.mxu0 %v119
    %165 = vmatprep.subr.mxu0 %v122
    %166 = vmatpush1.msra.mxu0 %v121
    %167 = vmatprep.subr.mxu0 %v124
    %168 = vmatpush1.msra.mxu0 %v123
    %169 = vmatprep.subr.mxu0 %v126
    %170 = vmatpush1.msra.mxu0 %v125
    %171 = vmatprep.subr.mxu0 %v128
    %172 = vmatpush1.msra.mxu0 %v127
    %173 = vmatprep.subr.mxu0 %v130
    %174 = vmatpush1.msra.mxu0 %v129
    %175 = vmatprep.subr.mxu0 %v132
    %176 = vmatpush1.msra.mxu0 %v131
    %177 = vmatprep.subr.mxu0 0.0
    %178 = vmatpush1.msra.mxu0 0.0
    %179 = vmatprep.subr.mxu0 0.0
    %180 = vmatpush1.msra.mxu0 0.0
    %181 = vmatprep.subr.mxu0 0.0
    %182 = vmatpush1.msra.mxu0 0.0
    %183 = vmatprep.subr.mxu0 0.0
    %184 = vmatpush1.msra.mxu0 0.0
    %185 = vmatprep.subr.mxu0 0.0
    %186 = vmatpush1.msra.mxu0 0.0
    %187 = vmatprep.subr.mxu0 0.0
    %188 = vmatpush1.msra.mxu0 0.0
    %189 = vmatprep.subr.mxu0 0.0
    %190 = vmatpush1.msra.mxu0 0.0
    %191 = vmatprep.subr.mxu0 0.0
    %192 = vmatpush1.msra.mxu0 0.0
    %193 = vmatprep.subr.mxu0 0.0
    %194 = vmatpush1.msra.mxu0 0.0
    %195 = vmatprep.subr.mxu0 0.0
    %196 = vmatpush1.msra.mxu0 0.0
    %197 = vmatprep.subr.mxu0 0.0
    %198 = vmatpush1.msra.mxu0 0.0
    %199 = vmatprep.subr.mxu0 0.0
    %200 = vmatpush1.msra.mxu0 0.0
    %201 = vmatprep.subr.mxu0 0.0
    %202 = vmatpush1.msra.mxu0 0.0
    %203 = vmatprep.subr.mxu0 0.0
    %204 = vmatpush1.msra.mxu0 0.0
    %205 = vmatprep.subr.mxu0 0.0
    %206 = vmatpush1.msra.mxu0 0.0
    %207 = vmatprep.subr.mxu0 0.0
    %208 = vmatpush1.msra.mxu0 0.0
    %209 = vmatprep.mubr.f32.mxu0 0.0
    %210 = vmatmul.mubr.f32.gmra.mrb[0].mxu0 %v99
    %v211 = vpop.f32.mrb[0].mxu0
    %v212 = vadd.f32 %v138, %v211
    %v213 = vpop.f32.mrb[0].mxu0
    %v214 = vadd.f32 %v142, %v213
    %215 = vmatprep.mubr.f32.mxu0 0.0
    %216 = vmatmul.mubr.f32.gmra.mrb[0].mxu0 %v100
    %v217 = vpop.f32.mrb[0].mxu0
    %v218 = vadd.f32 %v138, %v217
    %v219 = vpop.f32.mrb[0].mxu0
    %v220 = vadd.f32 %v142, %v219
    %221 = vdwg.mxu0
    %v222 = vxor.u32 %v212, 2147483648
    %v223 = vxor.u32 %v218, 2147483648
    %v224 = vmul.f32 %v222, 1.442695
    %v225 = vpow.pop %v224
    %v226 = vmul.f32 %v223, 1.442695
    %v227 = vpow.pop %v226
    %v228 = vadd.f32 %v225, 1.0
    %v229 = vadd.f32 %v227, 1.0
    %v230 = vrcp.pop %v228
    %v231 = vmul.f32 1.0, %v230
    %v232 = vrcp.pop %v229
    %v233 = vmul.f32 1.0, %v232
    %v234 = vmul.f32 %v212, %v231
    %v235 = vmul.f32 %v218, %v233
    %v236 = vmul.f32 %v234, %v214
    %v237 = vmul.f32 %v235, %v220
    %v238 = vld [vmem:[#allocation2] sm:$0xff]
    %v239 = vld [vmem:[#allocation2 + $0x8] sm:$0xff]
    %v240 = vld [vmem:[#allocation9] sm:$0xff]
    %v241 = vld [vmem:[#allocation9 + $0x8] sm:$0xff]
    %v242 = vld [vmem:[#allocation9 + $0x10] sm:$0xff]
    %v243 = vld [vmem:[#allocation9 + $0x18] sm:$0xff]
    %v244 = vld [vmem:[#allocation9 + $0x20] sm:$0xff]
    %v245 = vld [vmem:[#allocation9 + $0x28] sm:$0xff]
    %v246 = vld [vmem:[#allocation9 + $0x30] sm:$0xff]
    %v247 = vld [vmem:[#allocation9 + $0x38] sm:$0xff]
    %v248 = vld [vmem:[#allocation9 + $0x40] sm:$0xff]
    %v249 = vld [vmem:[#allocation9 + $0x48] sm:$0xff]
    %v250 = vld [vmem:[#allocation9 + $0x50] sm:$0xff]
    %v251 = vld [vmem:[#allocation9 + $0x58] sm:$0xff]
    %v252 = vld [vmem:[#allocation9 + $0x60] sm:$0xff]
    %v253 = vld [vmem:[#allocation9 + $0x68] sm:$0xff]
    %v254 = vld [vmem:[#allocation9 + $0x70] sm:$0xff]
    %v255 = vld [vmem:[#allocation9 + $0x78] sm:$0xff]
    %256 = vmatprep.subr.mxu0 0.0
    %257 = vmatpush1.msra.mxu0 %v240
    %258 = vmatprep.subr.mxu0 0.0
    %259 = vmatpush1.msra.mxu0 %v241
    %260 = vmatprep.subr.mxu0 0.0
    %261 = vmatpush1.msra.mxu0 %v242
    %262 = vmatprep.subr.mxu0 0.0
    %263 = vmatpush1.msra.mxu0 %v243
    %264 = vmatprep.subr.mxu0 0.0
    %265 = vmatpush1.msra.mxu0 %v244
    %266 = vmatprep.subr.mxu0 0.0
    %267 = vmatpush1.msra.mxu0 %v245
    %268 = vmatprep.subr.mxu0 0.0
    %269 = vmatpush1.msra.mxu0 %v246
    %270 = vmatprep.subr.mxu0 0.0
    %271 = vmatpush1.msra.mxu0 %v247
    %272 = vmatprep.subr.mxu0 0.0
    %273 = vmatpush1.msra.mxu0 %v248
    %274 = vmatprep.subr.mxu0 0.0
    %275 = vmatpush1.msra.mxu0 %v249
    %276 = vmatprep.subr.mxu0 0.0
    %277 = vmatpush1.msra.mxu0 %v250
    %278 = vmatprep.subr.mxu0 0.0
    %279 = vmatpush1.msra.mxu0 %v251
    %280 = vmatprep.subr.mxu0 0.0
    %281 = vmatpush1.msra.mxu0 %v252
    %282 = vmatprep.subr.mxu0 0.0
    %283 = vmatpush1.msra.mxu0 %v253
    %284 = vmatprep.subr.mxu0 0.0
    %285 = vmatpush1.msra.mxu0 %v254
    %286 = vmatprep.subr.mxu0 0.0
    %287 = vmatpush1.msra.mxu0 %v255
    %288 = vmatprep.subr.mxu0 0.0
    %289 = vmatpush1.msra.mxu0 0.0
    %290 = vmatprep.subr.mxu0 0.0
    %291 = vmatpush1.msra.mxu0 0.0
    %292 = vmatprep.subr.mxu0 0.0
    %293 = vmatpush1.msra.mxu0 0.0
    %294 = vmatprep.subr.mxu0 0.0
    %295 = vmatpush1.msra.mxu0 0.0
    %296 = vmatprep.subr.mxu0 0.0
    %297 = vmatpush1.msra.mxu0 0.0
    %298 = vmatprep.subr.mxu0 0.0
    %299 = vmatpush1.msra.mxu0 0.0
    %300 = vmatprep.subr.mxu0 0.0
    %301 = vmatpush1.msra.mxu0 0.0
    %302 = vmatprep.subr.mxu0 0.0
    %303 = vmatpush1.msra.mxu0 0.0
    %304 = vmatprep.subr.mxu0 0.0
    %305 = vmatpush1.msra.mxu0 0.0
    %306 = vmatprep.subr.mxu0 0.0
    %307 = vmatpush1.msra.mxu0 0.0
    %308 = vmatprep.subr.mxu0 0.0
    %309 = vmatpush1.msra.mxu0 0.0
    %310 = vmatprep.subr.mxu0 0.0
    %311 = vmatpush1.msra.mxu0 0.0
    %312 = vmatprep.subr.mxu0 0.0
    %313 = vmatpush1.msra.mxu0 0.0
    %314 = vmatprep.subr.mxu0 0.0
    %315 = vmatpush1.msra.mxu0 0.0
    %316 = vmatprep.subr.mxu0 0.0
    %317 = vmatpush1.msra.mxu0 0.0
    %318 = vmatprep.subr.mxu0 0.0
    %319 = vmatpush1.msra.mxu0 0.0
    %320 = vmatprep.mubr.f32.mxu0 0.0
    %321 = vmatmul.mubr.f32.gmra.mrb[0].mxu0 %v236
    %v322 = vpop.f32.mrb[0].mxu0
    %v323 = vadd.f32 0.0, %v322
    %v324 = vpop.f32.mrb[0].mxu0
    %325 = vmatprep.mubr.f32.mxu0 0.0
    %326 = vmatmul.mubr.f32.gmra.mrb[0].mxu0 %v237
    %v327 = vpop.f32.mrb[0].mxu0
    %v328 = vadd.f32 0.0, %v327
    %v329 = vpop.f32.mrb[0].mxu0
    %330 = vdwg.mxu0
    %v331 = vadd.f32 %v238, %v323
    %v332 = vadd.f32 %v239, %v328
    %333 = vst [vmem:[#allocation2] sm:$0xff] %v331
    %334 = vst [vmem:[#allocation2 + $0x8] sm:$0xff] %v332
    // Predicated region
    $region46: #{tpu_custom_call.1} parent=1 // pred_check
      %p335 = pneg %p85
    $region47: #{tpu_custom_call.1} parent=1 // pred_check_branch
      %337 = sbr.rel (%p335) target = $region49
    $region48: #{tpu_custom_call.1} parent=1 // pred_region
      %v338 = vld [vmem:[#allocation2] sm:$0xff]
      %v339 = vld [vmem:[#allocation2 + $0x8] sm:$0xff]
      %340 = vst [vmem:[#allocation12] sm:$0xff] %v338
      %341 = vst [vmem:[#allocation12 + $0x8] sm:$0xff] %v339
    $region49: #{tpu_custom_call.1} parent=1 // pred_fallthru
      _
    // Predicated region
    $region50: #{tpu_custom_call.1} parent=1 // pred_check
      _
    $region51: #{tpu_custom_call.1} parent=1 // pred_check_branch
      %343 = sbr.rel (0) target = $region53
    $region52: #{tpu_custom_call.1} parent=1 // pred_region
      %s345 = ssub.s32 256, 256
      %346 = vsyncadd [#allocation5], %s345
      %s347 = sshll.u32 [#allocation12], 4
      %s348 = int_to_ptr.vmem [resolvable:$true] %s347
      %353 = dma.vmem_to_hbm [thread:$0]  %s348, 256, %s5, [#allocation5], 128, 128, 8
    $region53: #{tpu_custom_call.1} parent=1 // pred_fallthru
      _
    // Predicated region
    $region54: #{tpu_custom_call.1} parent=1 // pred_check
      _
    $region55: #{tpu_custom_call.1} parent=1 // pred_check_branch
      %355 = sbr.rel (0) target = $region57
    $region56: #{tpu_custom_call.1} parent=1 // pred_region
      %356 = dma.done [#allocation5], 256
    $region57: #{tpu_custom_call.1} parent=1 // pred_fallthru
      _
    %357 = vsyncpa [#allocation4], 1
    %358 = vsyncpa [#allocation7], 1
    %359 = vsyncpa [#allocation10], 1
    %360 = vsyncpa [#allocation5], 1

</llo_original>
